<compile_context>
chip_gen: v7x
topology: tpu7x:2x2x1
jax: 0.10.0
libtpu: 0.0.40
codegen_flags: <defaults>
</compile_context>

<pallas_src>
import jax
import jax.numpy as jnp
from jax import lax
from jax.experimental import pallas as pl
from jax.experimental.pallas import tpu as pltpu

NCE_T = 0.07


def _patchnce_kernel(q_ref, k_ref, out_ref):
    # q_ref, k_ref: (Bt, C, S) in the inputs' native dtype.
    # out_ref:      (1, Bt, 1) per-batch-element loss sums for this grid step.
    q = q_ref[...]
    k = k_ref[...]

    inv_t = jnp.float32(1.0 / NCE_T)

    # l_pos_s = sum_c q[c, s] * k[c, s]  -- elementwise over C; avoids masking
    # and reducing the S*S matrix just to read its diagonal.
    l_pos = jnp.sum(q.astype(jnp.float32) * k.astype(jnp.float32), axis=1)  # (Bt, S)

    # l_neg = q^T k per batch element. Transpose q once in VMEM (minor-dim
    # swap) and run the canonical batched matmul on the MXU in native dtype,
    # accumulating in f32.
    qt = jnp.transpose(q, (0, 2, 1))                                        # (Bt, S, C)
    m = lax.dot_general(
        qt, k,
        dimension_numbers=(((2,), (1,)), ((0,), (0,))),
        preferred_element_type=jnp.float32)                                 # (Bt, S, S)

    S = m.shape[-1]
    row = lax.broadcasted_iota(jnp.int32, m.shape, 1)
    col = lax.broadcasted_iota(jnp.int32, m.shape, 2)
    diag = row == col

    neg = jnp.where(diag, jnp.float32(-10.0), m) * inv_t                    # (Bt, S, S)
    lps = (l_pos * inv_t)[:, :, None]                                       # (Bt, S, 1)

    # Cross entropy with target class 0 (the l_pos column):
    #   loss_s = logsumexp([lps_s, neg_s,:]) - lps_s
    mx = jnp.maximum(jnp.max(neg, axis=2, keepdims=True), lps)              # (Bt, S, 1)
    sumexp = jnp.sum(jnp.exp(neg - mx), axis=2, keepdims=True) + jnp.exp(lps - mx)
    lse = mx + jnp.log(sumexp)                                              # (Bt, S, 1)
    loss = lse - lps                                                        # (Bt, S, 1)

    out_ref[...] = jnp.sum(loss, axis=1)[None]                              # (1, Bt, 1)


def _vmem_estimate(bt, C, S, itemsize):
    inputs = 2 * 2 * bt * C * S * itemsize      # q & k tiles, double-buffered
    casts = 2 * bt * C * S * 4                  # f32 copies used on the l_pos path
    logits = 4 * bt * S * S * 4                 # m / masked / exp / mask temps
    return inputs + casts + logits + (1 << 20)


def _pick_batch_tile(B, C, S, itemsize, budget=16 << 20):
    # Largest divisor of B whose per-step working set fits the budget; falls
    # back to 1 (untiled large-S case -- see TODO above).
    for bt in range(B, 0, -1):
        if B % bt == 0 and _vmem_estimate(bt, C, S, itemsize) <= budget:
            return bt
    return 1


def patchnce_loss(f_q, f_k):
    """f_q, f_k: (b, c, h, w) with c*h*w divisible by 128. Returns scalar loss."""
    b = f_q.shape[0]
    fq = f_q.reshape(b, 128, -1)            # (B, 128, S), same as torch .view
    fk = f_k.reshape(b, 128, -1)
    B, C, S = fq.shape

    itemsize = jnp.dtype(fq.dtype).itemsize
    Bt = _pick_batch_tile(B, C, S, itemsize)
    n_steps = B // Bt

    est = _vmem_estimate(Bt, C, S, itemsize)
    vmem_limit = int(min(max(est + (4 << 20), 32 << 20), 100 << 20))

    partials = pl.pallas_call(
        _patchnce_kernel,
        out_shape=jax.ShapeDtypeStruct((n_steps, Bt, 1), jnp.float32),
        grid_spec=pltpu.PrefetchScalarGridSpec(
            num_scalar_prefetch=0,
            grid=(n_steps,),
            in_specs=[
                pl.BlockSpec((Bt, C, S), lambda i: (i, 0, 0)),
                pl.BlockSpec((Bt, C, S), lambda i: (i, 0, 0)),
            ],
            out_specs=pl.BlockSpec((1, Bt, 1), lambda i: (i, 0, 0)),
        ),
        compiler_params=pltpu.CompilerParams(
            dimension_semantics=("parallel",),   # no shared accumulator -> safe
            vmem_limit_bytes=vmem_limit,
        ),
        cost_estimate=pl.CostEstimate(
            flops=2 * B * S * S * C + 2 * B * S * C,
            transcendentals=B * S * (S + 2),
            bytes_accessed=2 * B * C * S * itemsize + B * 4,
        ),
    )(fq, fk)

    return jnp.sum(partials) / jnp.float32(B * S)


def _reference_loss(f_q, f_k):
    # Pure-JAX reference mirroring the PyTorch forward exactly.
    b = f_q.shape[0]
    fq = f_q.reshape(b, 128, -1)
    fk = f_k.reshape(b, 128, -1)
    B, C, S = fq.shape
    l_pos = jnp.sum(fk * fq, axis=1)[:, :, None]                 # (B, S, 1)
    l_neg = jnp.einsum('bcs,bct->bst', fq, fk)                   # (B, S, S)
    eye = jnp.eye(S, dtype=bool)[None]
    l_neg = jnp.where(eye, -10.0, l_neg)
    logits = jnp.concatenate([l_pos, l_neg], axis=2) / NCE_T     # (B, S, S+1)
    lse = jax.nn.logsumexp(logits, axis=2)
    loss = lse - logits[..., 0]                                  # target = 0
    return loss.mean()


if __name__ == "__main__":
    key = jax.random.PRNGKey(0)
    kq, kk = jax.random.split(key)
    # b=2, c=4, h=16, w=16  ->  c*h*w = 1024 = 128 * 8  ->  S = 8 patches
    f_q = jax.random.normal(kq, (2, 4, 16, 16), dtype=jnp.float32)
    f_k = jax.random.normal(kk, (2, 4, 16, 16), dtype=jnp.float32)

    loss = jax.block_until_ready(patchnce_loss(f_q, f_k))
    ref = jax.block_until_ready(_reference_loss(f_q, f_k))
    assert jnp.allclose(loss, ref, rtol=1e-5, atol=1e-5), (loss, ref)
    print("KERNEL_OK")
</pallas_src>

<mosaic_0001>
module attributes {stable_mosaic.version = 11 : i64} {
  func.func @_patchnce_kernel(%arg0: i32, %arg1: memref<2x128x8xf32, #tpu.memory_space<vmem>>, %arg2: memref<2x128x8xf32, #tpu.memory_space<vmem>>, %arg3: memref<1x2x1xf32, #tpu.memory_space<vmem>>) attributes {dimension_semantics = [#tpu.dimension_semantics<parallel>], iteration_bounds = array<i64: 1>, scalar_prefetch = 0 : i64, scratch_operands = 0 : i64, tpu.core_type = #tpu.core_type<tc>, window_params = [{transform_indices = @transform_0, window_bounds = array<i64: 2, 128, 8>}, {transform_indices = @transform_1, window_bounds = array<i64: 2, 128, 8>}, {transform_indices = @transform_2, window_bounds = array<i64: 1, 2, 1>}]} {
    %c0 = arith.constant 0 : index
    %c0_0 = arith.constant 0 : index
    %c0_1 = arith.constant 0 : index
    %0 = vector.load %arg1[%c0, %c0_0, %c0_1] : memref<2x128x8xf32, #tpu.memory_space<vmem>>, vector<2x128x8xf32>
    %c0_2 = arith.constant 0 : index
    %c0_3 = arith.constant 0 : index
    %c0_4 = arith.constant 0 : index
    %1 = vector.load %arg2[%c0_2, %c0_3, %c0_4] : memref<2x128x8xf32, #tpu.memory_space<vmem>>, vector<2x128x8xf32>
    %2 = arith.mulf %0, %1 : vector<2x128x8xf32>
    %cst = arith.constant dense<0.000000e+00> : vector<2x8xf32>
    %3 = vector.multi_reduction <add>, %2, %cst [1] : vector<2x128x8xf32> to vector<2x8xf32>
    %4 = tpu.transpose %0, [0, 2, 1] : vector<2x128x8xf32> -> vector<2x8x128xf32>
    %cst_5 = arith.constant dense<0.000000e+00> : vector<2x8x8xf32>
    %5 = tpu.matmul %4, %1, %cst_5 {dimension_numbers = #tpu.dot_dimension_numbers<[2], [1], [1], [2], [0, 0, 0, 1, 1, 2], [0], [0]>} : vector<2x8x128xf32>, vector<2x128x8xf32>, vector<2x8x8xf32> -> vector<2x8x8xf32>
    %6 = tpu.iota {dimensions = array<i32: 1>} : vector<2x8x8xi32>
    %7 = tpu.iota {dimensions = array<i32: 2>} : vector<2x8x8xi32>
    %8 = arith.cmpi eq, %6, %7 : vector<2x8x8xi32>
    %cst_6 = arith.constant -1.000000e+01 : f32
    %9 = vector.broadcast %cst_6 : f32 to vector<2x8x8xf32>
    %10 = arith.select %8, %9, %5 : vector<2x8x8xi1>, vector<2x8x8xf32>
    %cst_7 = arith.constant 14.2857141 : f32
    %11 = vector.broadcast %cst_7 : f32 to vector<2x8x8xf32>
    %12 = arith.mulf %10, %11 : vector<2x8x8xf32>
    %cst_8 = arith.constant 14.2857141 : f32
    %13 = vector.broadcast %cst_8 : f32 to vector<2x8xf32>
    %14 = arith.mulf %3, %13 : vector<2x8xf32>
    %15 = vector.shape_cast %14 : vector<2x8xf32> to vector<2x8x1xf32>
    %cst_9 = arith.constant dense<0xFF800000> : vector<2x8xf32>
    %16 = vector.multi_reduction <maximumf>, %12, %cst_9 [2] : vector<2x8x8xf32> to vector<2x8xf32>
    %17 = vector.shape_cast %16 : vector<2x8xf32> to vector<2x8x1xf32>
    %18 = arith.maximumf %17, %15 : vector<2x8x1xf32>
    %19 = vector.broadcast %18 : vector<2x8x1xf32> to vector<2x8x8xf32>
    %20 = arith.subf %12, %19 : vector<2x8x8xf32>
    %21 = math.exp %20 : vector<2x8x8xf32>
    %cst_10 = arith.constant dense<0.000000e+00> : vector<2x8xf32>
    %22 = vector.multi_reduction <add>, %21, %cst_10 [2] : vector<2x8x8xf32> to vector<2x8xf32>
    %23 = vector.shape_cast %22 : vector<2x8xf32> to vector<2x8x1xf32>
    %24 = arith.subf %15, %18 : vector<2x8x1xf32>
    %25 = math.exp %24 : vector<2x8x1xf32>
    %26 = arith.addf %23, %25 : vector<2x8x1xf32>
    %27 = math.log %26 : vector<2x8x1xf32>
    %28 = arith.addf %18, %27 : vector<2x8x1xf32>
    %29 = arith.subf %28, %15 : vector<2x8x1xf32>
    %cst_11 = arith.constant dense<0.000000e+00> : vector<2x1xf32>
    %30 = vector.multi_reduction <add>, %29, %cst_11 [1] : vector<2x8x1xf32> to vector<2x1xf32>
    %31 = vector.shape_cast %30 : vector<2x1xf32> to vector<1x2x1xf32>
    %c0_12 = arith.constant 0 : index
    %c0_13 = arith.constant 0 : index
    %c0_14 = arith.constant 0 : index
    %32 = vector.load %arg3[%c0_12, %c0_13, %c0_14] : memref<1x2x1xf32, #tpu.memory_space<vmem>>, vector<1x2x1xf32>
    tpu.vector_store %arg3[%c0_12, %c0_13, %c0_14], %31 {strides = array<i32>} : memref<1x2x1xf32, #tpu.memory_space<vmem>>, vector<1x2x1xf32>,
    return
  }
  func.func @transform_0(%arg0: i32) -> (i32, i32, i32) {
    %c0_i32 = arith.constant 0 : i32
    %c0_i32_0 = arith.constant 0 : i32
    %c0_i32_1 = arith.constant 0 : i32
    return %arg0, %c0_i32, %c0_i32_0 : i32, i32, i32
  }
  func.func @transform_1(%arg0: i32) -> (i32, i32, i32) {
    %c0_i32 = arith.constant 0 : i32
    %c0_i32_0 = arith.constant 0 : i32
    %c0_i32_1 = arith.constant 0 : i32
    return %arg0, %c0_i32, %c0_i32_0 : i32, i32, i32
  }
  func.func @transform_2(%arg0: i32) -> (i32, i32, i32) {
    %c0_i32 = arith.constant 0 : i32
    %c0_i32_0 = arith.constant 0 : i32
    %c0_i32_1 = arith.constant 0 : i32
    return %arg0, %c0_i32, %c0_i32_0 : i32, i32, i32
  }
}

</mosaic_0001>

<llo_original>
// kernel: tpu_custom_call.1
$region0: #{tpu_custom_call.1}
  #allocation0 [shape = 'u32[]', space=smem, size = 0x4, offset = 0x4, fixed_abs, tag = 'smem constant byte address 0x4 - core index']
  #allocation1 [shape = 'u32[144,128]{1,0:T(1,128)}', space=vmem, size = 0x12000, scoped, tag = 'internal scratch']
  %s0 = inlined_call_operand.vmem [shape: f32[2,128,8], index: 0, kind: input, shape index: {}]
  %s1 = inlined_call_operand.vmem [shape: f32[2,128,8], index: 1, kind: input, shape index: {}]
  %s2 = inlined_call_operand.vmem [shape: f32[1,2,1], index: 2, kind: output, shape index: {}]
  %s3 = sld [smem:[#allocation0]]
  $region18: #{tpu_custom_call.1} parent=0
    _
  %s5 = ssub.s32 1, %s3
  %s6 = scalar_select 0, %s5, %s3
  // Predicated region
  $region2: #{tpu_custom_call.1} parent=0 // pred_check
    _
  $region3: #{tpu_custom_call.1} parent=0 // pred_check_branch
    %8 = sbr.rel (0) target = $region5
  $region4: #{tpu_custom_call.1} parent=0 // pred_region
    _
  $region5: #{tpu_custom_call.1} parent=0 // pred_fallthru
    _
  // Predicated region
  $region6: #{tpu_custom_call.1} parent=0 // pred_check
    _
  $region7: #{tpu_custom_call.1} parent=0 // pred_check_branch
    %10 = sbr.rel (0) target = $region9
  $region8: #{tpu_custom_call.1} parent=0 // pred_region
    _
  $region9: #{tpu_custom_call.1} parent=0 // pred_fallthru
    _
  %v11 = vld [vmem:[%s0] sm:$0xff]
  %v12 = vld [vmem:[%s0 + $0x8] sm:$0xff]
  %v13 = vld [vmem:[%s0 + $0x10] sm:$0xff]
  %v14 = vld [vmem:[%s0 + $0x18] sm:$0xff]
  %v15 = vld [vmem:[%s0 + $0x20] sm:$0xff]
  %v16 = vld [vmem:[%s0 + $0x28] sm:$0xff]
  %v17 = vld [vmem:[%s0 + $0x30] sm:$0xff]
  %v18 = vld [vmem:[%s0 + $0x38] sm:$0xff]
  %v19 = vld [vmem:[%s0 + $0x40] sm:$0xff]
  %v20 = vld [vmem:[%s0 + $0x48] sm:$0xff]
  %v21 = vld [vmem:[%s0 + $0x50] sm:$0xff]
  %v22 = vld [vmem:[%s0 + $0x58] sm:$0xff]
  %v23 = vld [vmem:[%s0 + $0x60] sm:$0xff]
  %v24 = vld [vmem:[%s0 + $0x68] sm:$0xff]
  %v25 = vld [vmem:[%s0 + $0x70] sm:$0xff]
  %v26 = vld [vmem:[%s0 + $0x78] sm:$0xff]
  %v27 = vld [vmem:[%s0 + $0x80] sm:$0xff]
  %v28 = vld [vmem:[%s0 + $0x88] sm:$0xff]
  %v29 = vld [vmem:[%s0 + $0x90] sm:$0xff]
  %v30 = vld [vmem:[%s0 + $0x98] sm:$0xff]
  %v31 = vld [vmem:[%s0 + $0xa0] sm:$0xff]
  %v32 = vld [vmem:[%s0 + $0xa8] sm:$0xff]
  %v33 = vld [vmem:[%s0 + $0xb0] sm:$0xff]
  %v34 = vld [vmem:[%s0 + $0xb8] sm:$0xff]
  %v35 = vld [vmem:[%s0 + $0xc0] sm:$0xff]
  %v36 = vld [vmem:[%s0 + $0xc8] sm:$0xff]
  %v37 = vld [vmem:[%s0 + $0xd0] sm:$0xff]
  %v38 = vld [vmem:[%s0 + $0xd8] sm:$0xff]
  %v39 = vld [vmem:[%s0 + $0xe0] sm:$0xff]
  %v40 = vld [vmem:[%s0 + $0xe8] sm:$0xff]
  %v41 = vld [vmem:[%s0 + $0xf0] sm:$0xff]
  %v42 = vld [vmem:[%s0 + $0xf8] sm:$0xff]
  %v43 = vld [vmem:[%s1] sm:$0xff]
  %v44 = vld [vmem:[%s1 + $0x8] sm:$0xff]
  %v45 = vld [vmem:[%s1 + $0x10] sm:$0xff]
  %v46 = vld [vmem:[%s1 + $0x18] sm:$0xff]
  %v47 = vld [vmem:[%s1 + $0x20] sm:$0xff]
  %v48 = vld [vmem:[%s1 + $0x28] sm:$0xff]
  %v49 = vld [vmem:[%s1 + $0x30] sm:$0xff]
  %v50 = vld [vmem:[%s1 + $0x38] sm:$0xff]
  %v51 = vld [vmem:[%s1 + $0x40] sm:$0xff]
  %v52 = vld [vmem:[%s1 + $0x48] sm:$0xff]
  %v53 = vld [vmem:[%s1 + $0x50] sm:$0xff]
  %v54 = vld [vmem:[%s1 + $0x58] sm:$0xff]
  %v55 = vld [vmem:[%s1 + $0x60] sm:$0xff]
  %v56 = vld [vmem:[%s1 + $0x68] sm:$0xff]
  %v57 = vld [vmem:[%s1 + $0x70] sm:$0xff]
  %v58 = vld [vmem:[%s1 + $0x78] sm:$0xff]
  %v59 = vld [vmem:[%s1 + $0x80] sm:$0xff]
  %v60 = vld [vmem:[%s1 + $0x88] sm:$0xff]
  %v61 = vld [vmem:[%s1 + $0x90] sm:$0xff]
  %v62 = vld [vmem:[%s1 + $0x98] sm:$0xff]
  %v63 = vld [vmem:[%s1 + $0xa0] sm:$0xff]
  %v64 = vld [vmem:[%s1 + $0xa8] sm:$0xff]
  %v65 = vld [vmem:[%s1 + $0xb0] sm:$0xff]
  %v66 = vld [vmem:[%s1 + $0xb8] sm:$0xff]
  %v67 = vld [vmem:[%s1 + $0xc0] sm:$0xff]
  %v68 = vld [vmem:[%s1 + $0xc8] sm:$0xff]
  %v69 = vld [vmem:[%s1 + $0xd0] sm:$0xff]
  %v70 = vld [vmem:[%s1 + $0xd8] sm:$0xff]
  %v71 = vld [vmem:[%s1 + $0xe0] sm:$0xff]
  %v72 = vld [vmem:[%s1 + $0xe8] sm:$0xff]
  %v73 = vld [vmem:[%s1 + $0xf0] sm:$0xff]
  %v74 = vld [vmem:[%s1 + $0xf8] sm:$0xff]
  %v75 = vmul.f32 %v11, %v43
  %v76 = vmul.f32 %v12, %v44
  %v77 = vmul.f32 %v13, %v45
  %v78 = vmul.f32 %v14, %v46
  %v79 = vmul.f32 %v15, %v47
  %v80 = vmul.f32 %v16, %v48
  %v81 = vmul.f32 %v17, %v49
  %v82 = vmul.f32 %v18, %v50
  %v83 = vmul.f32 %v19, %v51
  %v84 = vmul.f32 %v20, %v52
  %v85 = vmul.f32 %v21, %v53
  %v86 = vmul.f32 %v22, %v54
  %v87 = vmul.f32 %v23, %v55
  %v88 = vmul.f32 %v24, %v56
  %v89 = vmul.f32 %v25, %v57
  %v90 = vmul.f32 %v26, %v58
  %v91 = vmul.f32 %v27, %v59
  %v92 = vmul.f32 %v28, %v60
  %v93 = vmul.f32 %v29, %v61
  %v94 = vmul.f32 %v30, %v62
  %v95 = vmul.f32 %v31, %v63
  %v96 = vmul.f32 %v32, %v64
  %v97 = vmul.f32 %v33, %v65
  %v98 = vmul.f32 %v34, %v66
  %v99 = vmul.f32 %v35, %v67
  %v100 = vmul.f32 %v36, %v68
  %v101 = vmul.f32 %v37, %v69
  %v102 = vmul.f32 %v38, %v70
  %v103 = vmul.f32 %v39, %v71
  %v104 = vmul.f32 %v40, %v72
  %v105 = vmul.f32 %v41, %v73
  %v106 = vmul.f32 %v42, %v74
  %vm107 = vcmask 64512
  %v108 = vsel %vm107, %v75, 0.0
  %v109 = vsel %vm107, %v76, 0.0
  %v110 = vadd.f32 %v108, %v109
  %v111 = vsel %vm107, %v77, 0.0
  %v112 = vadd.f32 %v110, %v111
  %v113 = vsel %vm107, %v78, 0.0
  %v114 = vadd.f32 %v112, %v113
  %v115 = vsel %vm107, %v79, 0.0
  %v116 = vadd.f32 %v114, %v115
  %v117 = vsel %vm107, %v80, 0.0
  %v118 = vadd.f32 %v116, %v117
  %v119 = vsel %vm107, %v81, 0.0
  %v120 = vadd.f32 %v118, %v119
  %v121 = vsel %vm107, %v82, 0.0
  %v122 = vadd.f32 %v120, %v121
  %v123 = vsel %vm107, %v83, 0.0
  %v124 = vadd.f32 %v122, %v123
  %v125 = vsel %vm107, %v84, 0.0
  %v126 = vadd.f32 %v124, %v125
  %v127 = vsel %vm107, %v85, 0.0
  %v128 = vadd.f32 %v126, %v127
  %v129 = vsel %vm107, %v86, 0.0
  %v130 = vadd.f32 %v128, %v129
  %v131 = vsel %vm107, %v87, 0.0
  %v132 = vadd.f32 %v130, %v131
  %v133 = vsel %vm107, %v88, 0.0
  %v134 = vadd.f32 %v132, %v133
  %v135 = vsel %vm107, %v89, 0.0
  %v136 = vadd.f32 %v134, %v135
  %v137 = vsel %vm107, %v90, 0.0
  %v138 = vadd.f32 %v136, %v137
  %v139 = vrot.slane %v138, 4
  %v140 = vadd.f32 %v138, %v139
  %v141 = vrot.slane %v140, 2
  %v142 = vadd.f32 %v140, %v141
  %v143 = vrot.slane %v142, 1
  %v144 = vadd.f32 %v142, %v143
  %v145 = vsel %vm107, %v91, 0.0
  %v146 = vsel %vm107, %v92, 0.0
  %v147 = vadd.f32 %v145, %v146
  %v148 = vsel %vm107, %v93, 0.0
  %v149 = vadd.f32 %v147, %v148
  %v150 = vsel %vm107, %v94, 0.0
  %v151 = vadd.f32 %v149, %v150
  %v152 = vsel %vm107, %v95, 0.0
  %v153 = vadd.f32 %v151, %v152
  %v154 = vsel %vm107, %v96, 0.0
  %v155 = vadd.f32 %v153, %v154
  %v156 = vsel %vm107, %v97, 0.0
  %v157 = vadd.f32 %v155, %v156
  %v158 = vsel %vm107, %v98, 0.0
  %v159 = vadd.f32 %v157, %v158
  %v160 = vsel %vm107, %v99, 0.0
  %v161 = vadd.f32 %v159, %v160
  %v162 = vsel %vm107, %v100, 0.0
  %v163 = vadd.f32 %v161, %v162
  %v164 = vsel %vm107, %v101, 0.0
  %v165 = vadd.f32 %v163, %v164
  %v166 = vsel %vm107, %v102, 0.0
  %v167 = vadd.f32 %v165, %v166
  %v168 = vsel %vm107, %v103, 0.0
  %v169 = vadd.f32 %v167, %v168
  %v170 = vsel %vm107, %v104, 0.0
  %v171 = vadd.f32 %v169, %v170
  %v172 = vsel %vm107, %v105, 0.0
  %v173 = vadd.f32 %v171, %v172
  %v174 = vsel %vm107, %v106, 0.0
  %v175 = vadd.f32 %v173, %v174
  %v176 = vrot.slane %v175, 4
  %v177 = vadd.f32 %v175, %v176
  %v178 = vrot.slane %v177, 2
  %v179 = vadd.f32 %v177, %v178
  %v180 = vrot.slane %v179, 1
  %v181 = vadd.f32 %v179, %v180
  %182 = vxpose.xlu0.b32.start [1/16] %v11, 128
  %183 = vxpose.xlu0.b32.cont [2/16] %v12, 128
  %184 = vxpose.xlu0.b32.cont [3/16] %v13, 128
  %185 = vxpose.xlu0.b32.cont [4/16] %v14, 128
  %186 = vxpose.xlu0.b32.cont [5/16] %v15, 128
  %187 = vxpose.xlu0.b32.cont [6/16] %v16, 128
  %188 = vxpose.xlu0.b32.cont [7/16] %v17, 128
  %189 = vxpose.xlu0.b32.cont [8/16] %v18, 128
  %190 = vxpose.xlu0.b32.cont [9/16] %v19, 128
  %191 = vxpose.xlu0.b32.cont [10/16] %v20, 128
  %192 = vxpose.xlu0.b32.cont [11/16] %v21, 128
  %193 = vxpose.xlu0.b32.cont [12/16] %v22, 128
  %194 = vxpose.xlu0.b32.cont [13/16] %v23, 128
  %195 = vxpose.xlu0.b32.cont [14/16] %v24, 128
  %196 = vxpose.xlu0.b32.cont [15/16] %v25, 128
  %197 = vxpose.xlu0.b32.end [16/16] %v26, 128
  %v198 = vpop.trf.xlu0
  %v199 = vpop.trf.xlu0
  %v200 = vpop.trf.xlu0
  %v201 = vpop.trf.xlu0
  %v202 = vpop.trf.xlu0
  %v203 = vpop.trf.xlu0
  %v204 = vpop.trf.xlu0
  %v205 = vpop.trf.xlu0
  %v206 = vpop.trf.xlu0
  %v207 = vpop.trf.xlu0
  %v208 = vpop.trf.xlu0
  %v209 = vpop.trf.xlu0
  %v210 = vpop.trf.xlu0
  %v211 = vpop.trf.xlu0
  %v212 = vpop.trf.xlu0
  %v213 = vpop.trf.xlu0
  %214 = vxpose.xlu0.b32.start [1/16] %v27, 128
  %215 = vxpose.xlu0.b32.cont [2/16] %v28, 128
  %216 = vxpose.xlu0.b32.cont [3/16] %v29, 128
  %217 = vxpose.xlu0.b32.cont [4/16] %v30, 128
  %218 = vxpose.xlu0.b32.cont [5/16] %v31, 128
  %219 = vxpose.xlu0.b32.cont [6/16] %v32, 128
  %220 = vxpose.xlu0.b32.cont [7/16] %v33, 128
  %221 = vxpose.xlu0.b32.cont [8/16] %v34, 128
  %222 = vxpose.xlu0.b32.cont [9/16] %v35, 128
  %223 = vxpose.xlu0.b32.cont [10/16] %v36, 128
  %224 = vxpose.xlu0.b32.cont [11/16] %v37, 128
  %225 = vxpose.xlu0.b32.cont [12/16] %v38, 128
  %226 = vxpose.xlu0.b32.cont [13/16] %v39, 128
  %227 = vxpose.xlu0.b32.cont [14/16] %v40, 128
  %228 = vxpose.xlu0.b32.cont [15/16] %v41, 128
  %229 = vxpose.xlu0.b32.end [16/16] %v42, 128
  %v230 = vpop.trf.xlu0
  %v231 = vpop.trf.xlu0
  %v232 = vpop.trf.xlu0
  %v233 = vpop.trf.xlu0
  %v234 = vpop.trf.xlu0
  %v235 = vpop.trf.xlu0
  %v236 = vpop.trf.xlu0
  %v237 = vpop.trf.xlu0
  %v238 = vpop.trf.xlu0
  %v239 = vpop.trf.xlu0
  %v240 = vpop.trf.xlu0
  %v241 = vpop.trf.xlu0
  %v242 = vpop.trf.xlu0
  %v243 = vpop.trf.xlu0
  %v244 = vpop.trf.xlu0
  %v245 = vpop.trf.xlu0
  %246 = vmatprep.subr.mxu0 0.0
  %247 = vmatpush1.msra.mxu0 %v43
  %248 = vmatprep.subr.mxu0 0.0
  %249 = vmatpush1.msra.mxu0 %v44
  %250 = vmatprep.subr.mxu0 0.0
  %251 = vmatpush1.msra.mxu0 %v45
  %252 = vmatprep.subr.mxu0 0.0
  %253 = vmatpush1.msra.mxu0 %v46
  %254 = vmatprep.subr.mxu0 0.0
  %255 = vmatpush1.msra.mxu0 %v47
  %256 = vmatprep.subr.mxu0 0.0
  %257 = vmatpush1.msra.mxu0 %v48
  %258 = vmatprep.subr.mxu0 0.0
  %259 = vmatpush1.msra.mxu0 %v49
  %260 = vmatprep.subr.mxu0 0.0
  %261 = vmatpush1.msra.mxu0 %v50
  %262 = vmatprep.subr.mxu0 0.0
  %263 = vmatpush1.msra.mxu0 %v51
  %264 = vmatprep.subr.mxu0 0.0
  %265 = vmatpush1.msra.mxu0 %v52
  %266 = vmatprep.subr.mxu0 0.0
  %267 = vmatpush1.msra.mxu0 %v53
  %268 = vmatprep.subr.mxu0 0.0
  %269 = vmatpush1.msra.mxu0 %v54
  %270 = vmatprep.subr.mxu0 0.0
  %271 = vmatpush1.msra.mxu0 %v55
  %272 = vmatprep.subr.mxu0 0.0
  %273 = vmatpush1.msra.mxu0 %v56
  %274 = vmatprep.subr.mxu0 0.0
  %275 = vmatpush1.msra.mxu0 %v57
  %276 = vmatprep.subr.mxu0 0.0
  %277 = vmatpush1.msra.mxu0 %v58
  %278 = vmatprep.subr.mxu0 0.0
  %279 = vmatpush1.msra.mxu0 0.0
  %280 = vmatprep.subr.mxu0 0.0
  %281 = vmatpush1.msra.mxu0 0.0
  %282 = vmatprep.subr.mxu0 0.0
  %283 = vmatpush1.msra.mxu0 0.0
  %284 = vmatprep.subr.mxu0 0.0
  %285 = vmatpush1.msra.mxu0 0.0
  %286 = vmatprep.subr.mxu0 0.0
  %287 = vmatpush1.msra.mxu0 0.0
  %288 = vmatprep.subr.mxu0 0.0
  %289 = vmatpush1.msra.mxu0 0.0
  %290 = vmatprep.subr.mxu0 0.0
  %291 = vmatpush1.msra.mxu0 0.0
  %292 = vmatprep.subr.mxu0 0.0
  %293 = vmatpush1.msra.mxu0 0.0
  %294 = vmatprep.subr.mxu0 0.0
  %295 = vmatpush1.msra.mxu0 0.0
  %296 = vmatprep.subr.mxu0 0.0
  %297 = vmatpush1.msra.mxu0 0.0
  %298 = vmatprep.subr.mxu0 0.0
  %299 = vmatpush1.msra.mxu0 0.0
  %300 = vmatprep.subr.mxu0 0.0
  %301 = vmatpush1.msra.mxu0 0.0
  %302 = vmatprep.subr.mxu0 0.0
  %303 = vmatpush1.msra.mxu0 0.0
  %304 = vmatprep.subr.mxu0 0.0
  %305 = vmatpush1.msra.mxu0 0.0
  %306 = vmatprep.subr.mxu0 0.0
  %307 = vmatpush1.msra.mxu0 0.0
  %308 = vmatprep.subr.mxu0 0.0
  %309 = vmatpush1.msra.mxu0 0.0
  %310 = vmatprep.mubr.f32.mxu0 0.0
  %311 = vmatmul.mubr.f32.gmra.mrb[0].mxu0 %v198
  %v312 = vpop.f32.mrb[0].mxu0
  %v313 = vadd.f32 0.0, %v312
  %v314 = vpop.f32.mrb[0].mxu0
  %315 = vdwg.mxu0
  %316 = vmatprep.subr.mxu0 0.0
  %317 = vmatpush1.msra.mxu0 %v59
  %318 = vmatprep.subr.mxu0 0.0
  %319 = vmatpush1.msra.mxu0 %v60
  %320 = vmatprep.subr.mxu0 0.0
  %321 = vmatpush1.msra.mxu0 %v61
  %322 = vmatprep.subr.mxu0 0.0
  %323 = vmatpush1.msra.mxu0 %v62
  %324 = vmatprep.subr.mxu0 0.0
  %325 = vmatpush1.msra.mxu0 %v63
  %326 = vmatprep.subr.mxu0 0.0
  %327 = vmatpush1.msra.mxu0 %v64
  %328 = vmatprep.subr.mxu0 0.0
  %329 = vmatpush1.msra.mxu0 %v65
  %330 = vmatprep.subr.mxu0 0.0
  %331 = vmatpush1.msra.mxu0 %v66
  %332 = vmatprep.subr.mxu0 0.0
  %333 = vmatpush1.msra.mxu0 %v67
  %334 = vmatprep.subr.mxu0 0.0
  %335 = vmatpush1.msra.mxu0 %v68
  %336 = vmatprep.subr.mxu0 0.0
  %337 = vmatpush1.msra.mxu0 %v69
  %338 = vmatprep.subr.mxu0 0.0
  %339 = vmatpush1.msra.mxu0 %v70
  %340 = vmatprep.subr.mxu0 0.0
  %341 = vmatpush1.msra.mxu0 %v71
  %342 = vmatprep.subr.mxu0 0.0
  %343 = vmatpush1.msra.mxu0 %v72
  %344 = vmatprep.subr.mxu0 0.0
  %345 = vmatpush1.msra.mxu0 %v73
  %346 = vmatprep.subr.mxu0 0.0
  %347 = vmatpush1.msra.mxu0 %v74
  %348 = vmatprep.subr.mxu0 0.0
  %349 = vmatpush1.msra.mxu0 0.0
  %350 = vmatprep.subr.mxu0 0.0
  %351 = vmatpush1.msra.mxu0 0.0
  %352 = vmatprep.subr.mxu0 0.0
  %353 = vmatpush1.msra.mxu0 0.0
  %354 = vmatprep.subr.mxu0 0.0
  %355 = vmatpush1.msra.mxu0 0.0
  %356 = vmatprep.subr.mxu0 0.0
  %357 = vmatpush1.msra.mxu0 0.0
  %358 = vmatprep.subr.mxu0 0.0
  %359 = vmatpush1.msra.mxu0 0.0
  %360 = vmatprep.subr.mxu0 0.0
  %361 = vmatpush1.msra.mxu0 0.0
  %362 = vmatprep.subr.mxu0 0.0
  %363 = vmatpush1.msra.mxu0 0.0
  %364 = vmatprep.subr.mxu0 0.0
  %365 = vmatpush1.msra.mxu0 0.0
  %366 = vmatprep.subr.mxu0 0.0
  %367 = vmatpush1.msra.mxu0 0.0
  %368 = vmatprep.subr.mxu0 0.0
  %369 = vmatpush1.msra.mxu0 0.0
  %370 = vmatprep.subr.mxu0 0.0
  %371 = vmatpush1.msra.mxu0 0.0
  %372 = vmatprep.subr.mxu0 0.0
  %373 = vmatpush1.msra.mxu0 0.0
  %374 = vmatprep.subr.mxu0 0.0
  %375 = vmatpush1.msra.mxu0 0.0
  %376 = vmatprep.subr.mxu0 0.0
  %377 = vmatpush1.msra.mxu0 0.0
  %378 = vmatprep.subr.mxu0 0.0
  %379 = vmatpush1.msra.mxu0 0.0
  %380 = vmatprep.mubr.f32.mxu0 0.0
  %381 = vmatmul.mubr.f32.gmra.mrb[0].mxu0 %v230
  %v382 = vpop.f32.mrb[0].mxu0
  %v383 = vadd.f32 0.0, %v382
  %v384 = vpop.f32.mrb[0].mxu0
  %385 = vdwg.mxu0
  %v386 = vlaneseq
  %v387 = vshrl.u32 %v386, 7
  %v388 = vlaneseq
  %v389 = vand.u32 %v388, 127
  %vm390 = vcmp.eq.s32.totalorder %v387, %v389
  %v391 = vsel %vm390, -10.0, %v313
  %v392 = vsel %vm390, -10.0, %v383
  %v393 = vmul.f32 %v391, 14.285714
  %v394 = vmul.f32 %v392, 14.285714
  %v395 = vmul.f32 %v144, 14.285714
  %v396 = vmul.f32 %v181, 14.285714
  %398 = vbcast.lane.b32.xlu0 %v395, 256
  %v399 = vpop.permute.xlu0 %398
  %401 = vbcast.lane.b32.xlu0 %v396, 256
  %v402 = vpop.permute.xlu0 %401
  %v403 = vsel %vm107, %v393, -inf
  %404 = vmax.xlane.f32.xlu0 %v403
  %v405 = vpop.xlane.xlu0 %404
  %v406 = vsel %vm107, %v394, -inf
  %407 = vmax.xlane.f32.xlu0 %v406
  %v408 = vpop.xlane.xlu0 %407
  %v409 = vmax.f32 %v405, %v399
  %v410 = vmax.f32 %v408, %v402
  %v411 = vsub.f32 %v393, %v409
  %v412 = vsub.f32 %v394, %v410
  %v413 = vmul.f32 %v411, 1.442695
  %v414 = vpow.pop %v413
  %v415 = vmul.f32 %v412, 1.442695
  %v416 = vpow.pop %v415
  %v417 = vsel %vm107, %v414, 0.0
  %418 = vadd.xlane.f32.xlu0 %v417
  %v419 = vpop.xlane.xlu0 %418
  %v420 = vsel %vm107, %v416, 0.0
  %421 = vadd.xlane.f32.xlu0 %v420
  %v422 = vpop.xlane.xlu0 %421
  %v423 = vsub.f32 %v399, %v409
  %v424 = vsub.f32 %v402, %v410
  %v425 = vmul.f32 %v423, 1.442695
  %v426 = vpow.pop %v425
  %v427 = vmul.f32 %v424, 1.442695
  %v428 = vpow.pop %v427
  %v429 = vadd.f32 %v419, %v426
  %v430 = vadd.f32 %v422, %v428
  %v431 = vlog2.pop %v429
  %v432 = vmul.f32 %v431, 0.6931472
  %v433 = vlog2.pop %v430
  %v434 = vmul.f32 %v433, 0.6931472
  %v435 = vadd.f32 %v409, %v432
  %v436 = vadd.f32 %v410, %v434
  %v437 = vsub.f32 %v435, %v399
  %v438 = vsub.f32 %v436, %v402
  %v439 = vrot.slane %v437, 4
  %v440 = vadd.f32 %v437, %v439
  %v441 = vrot.slane %v440, 2
  %v442 = vadd.f32 %v440, %v441
  %v443 = vrot.slane %v442, 1
  %v444 = vadd.f32 %v442, %v443
  %v445 = vrot.slane %v438, 4
  %v446 = vadd.f32 %v438, %v445
  %v447 = vrot.slane %v446, 2
  %v448 = vadd.f32 %v446, %v447
  %v449 = vrot.slane %v448, 1
  %v450 = vadd.f32 %v448, %v449
  %vm453 = vcmask 1041409
  %v454 = vsel %vm453, %v450, %v444
  %vm456 = vcmask 1024
  %457 = vst.msk [vmem:[%s2] sm:$0x3] %vm456, %v454
  // Predicated region
  $region10: #{tpu_custom_call.1} parent=0 // pred_check
    _
  $region11: #{tpu_custom_call.1} parent=0 // pred_check_branch
    %459 = sbr.rel (0) target = $region13
  $region12: #{tpu_custom_call.1} parent=0 // pred_region
    _
  $region13: #{tpu_custom_call.1} parent=0 // pred_fallthru
    _
  // Predicated region
  $region14: #{tpu_custom_call.1} parent=0 // pred_check
    _
  $region15: #{tpu_custom_call.1} parent=0 // pred_check_branch
    %461 = sbr.rel (0) target = $region17
  $region16: #{tpu_custom_call.1} parent=0 // pred_region
    _
  $region17: #{tpu_custom_call.1} parent=0 // pred_fallthru
    _

</llo_original>
